<compile_context>
chip_gen: v7x
topology: tpu7x:2x2x1
jax: 0.10.0
libtpu: 0.0.40
codegen_flags: <defaults>
</compile_context>

<pallas_src>
import functools

import jax
import jax.numpy as jnp
from jax.experimental import pallas as pl
from jax.experimental.pallas import tpu as pltpu

_MIB = 1024 * 1024


def _round_up(x, m):
    return (x + m - 1) // m * m


def _phys_vmem_bytes():
    try:
        info = pltpu.get_tpu_info()
        return int(getattr(info, "vmem_capacity_bytes", 128 * _MIB))
    except Exception:
        return 128 * _MIB


def _tile_caps(m, n, kdim, use_bf16):
    """Chip/shape-aware tile caps + scoped-VMEM limit."""
    del kdim, use_bf16  # caps below already fit both dtypes comfortably
    big_vmem = _phys_vmem_bytes() >= 128 * _MIB  # v5e / v6e; v7x has 64 MiB/TC
    # W tile is re-read (M/tm) times and x is re-read (N/tn) times: bias the
    # larger tile toward the axis whose operand would be re-streamed more.
    if n >= 2 * m:
        tm_cap, tn_cap = 1024, 512
    else:
        tm_cap, tn_cap = 512, 1024
    tk_cap = 2048 if big_vmem else 1024
    vmem_limit = (64 if big_vmem else 32) * _MIB
    return tm_cap, tn_cap, tk_cap, vmem_limit


# ---------------------------------------------------------------------------
# Kernels
# ---------------------------------------------------------------------------
def _linear_kernel_acc(x_ref, w_ref, b_ref, o_ref, acc_ref):
    # x_ref: (tm, tk)  w_ref: (tk, tn)  b_ref: (1, tn)  o_ref: (tm, tn)
    k = pl.program_id(2)

    @pl.when(k == 0)
    def _():
        acc_ref[...] = jnp.zeros_like(acc_ref)

    acc_ref[...] += jnp.dot(
        x_ref[...], w_ref[...], preferred_element_type=jnp.float32
    )

    @pl.when(k == pl.num_programs(2) - 1)
    def _():
        o_ref[...] = (acc_ref[...] + b_ref[...]).astype(o_ref.dtype)


def _linear_kernel_single_k(x_ref, w_ref, b_ref, o_ref):
    # Whole reduction fits one tile: no scratch, no init/finalize branches.
    o_ref[...] = (
        jnp.dot(x_ref[...], w_ref[...], preferred_element_type=jnp.float32)
        + b_ref[...]
    ).astype(o_ref.dtype)


# ---------------------------------------------------------------------------
# Parameter preparation (run ONCE, outside the per-step jit)
# ---------------------------------------------------------------------------
def prepare_output_layer_params(weight, bias, *, use_bf16=True, m_hint=None):
    """Cast, transpose (output_dim, d_model) -> (d_model, output_dim) and pad
    the parameters to tile multiples.  Returns (w_t, bias_2d, meta)."""
    n, kdim = weight.shape
    m_hint = int(m_hint) if m_hint is not None else n
    _, tn_cap, tk_cap, _ = _tile_caps(m_hint, n, kdim, use_bf16)

    tn = min(tn_cap, _round_up(n, 128))     # lane-dense output tiles
    tk = min(tk_cap, _round_up(kdim, 128))
    np_ = _round_up(n, tn)
    kp = _round_up(kdim, tk)

    compute_dtype = jnp.bfloat16 if use_bf16 else jnp.dtype(weight.dtype)
    w_t = jnp.asarray(weight, compute_dtype).T          # (K, N), K-major MXU
    if (kp, np_) != (kdim, n):
        w_t = jnp.pad(w_t, ((0, kp - kdim), (0, np_ - n)))

    b2d = jnp.asarray(bias, jnp.float32).reshape(1, n)  # bias stays f32
    if np_ != n:
        b2d = jnp.pad(b2d, ((0, 0), (0, np_ - n)))

    return w_t, b2d, dict(n=n, kdim=kdim, tn=tn, tk=tk)


# ---------------------------------------------------------------------------
# Forward
# ---------------------------------------------------------------------------
@functools.partial(jax.jit, static_argnames=("n", "kdim", "tn", "tk"))
def _forward_prepared(x, w_t, b2d, *, n, kdim, tn, tk):
    """y = x @ W^T + b with pre-prepared (transposed, padded) parameters."""
    batch, seq, d_in = x.shape
    assert d_in == kdim
    m = batch * seq
    out_dtype = x.dtype
    in_dtype = w_t.dtype
    kp, np_ = w_t.shape

    x2d = x.reshape(m, kdim).astype(in_dtype)

    sub = 16 if in_dtype == jnp.bfloat16 else 8  # bf16 packs 2 rows / sublane
    tm_cap, _, _, vmem_limit = _tile_caps(m, n, kdim, in_dtype == jnp.bfloat16)
    tm = min(tm_cap, _round_up(m, sub))
    mp = _round_up(m, tm)

    # Zero-pad activation (zeros contribute nothing to the dot / bias).
    if (mp, kp) != (m, kdim):
        x2d = jnp.pad(x2d, ((0, mp - m), (0, kp - kdim)))

    gm, gn, gk = mp // tm, np_ // tn, kp // tk

    if gk == 1:
        kernel = _linear_kernel_single_k
        scratch = []
    else:
        kernel = _linear_kernel_acc
        scratch = [pltpu.VMEM((tm, tn), jnp.float32)]

    # Keep a >1 "parallel" axis leading so both v7x TensorCores get work.
    swap_mn = (gm == 1 and gn > 1)
    if swap_mn:
        grid = (gn, gm, gk)
        x_map = lambda j, i, k: (i, k)
        w_map = lambda j, i, k: (k, j)
        b_map = lambda j, i, k: (0, j)
        o_map = lambda j, i, k: (i, j)
    else:
        grid = (gm, gn, gk)
        x_map = lambda i, j, k: (i, k)
        w_map = lambda i, j, k: (k, j)
        b_map = lambda i, j, k: (0, j)
        o_map = lambda i, j, k: (i, j)

    in_bytes = jnp.dtype(in_dtype).itemsize
    out_bytes = jnp.dtype(out_dtype).itemsize
    cost = pl.CostEstimate(
        flops=2 * m * n * kdim,
        transcendentals=0,
        bytes_accessed=(
            mp * kp * in_bytes * gn       # x re-streamed once per N tile
            + kp * np_ * in_bytes * gm    # W re-streamed once per M tile
            + np_ * 4                     # bias
            + mp * np_ * out_bytes        # output
        ),
    )

    y2d = pl.pallas_call(
        kernel,
        out_shape=jax.ShapeDtypeStruct((mp, np_), out_dtype),
        grid_spec=pltpu.PrefetchScalarGridSpec(
            num_scalar_prefetch=0,
            grid=grid,
            in_specs=[
                pl.BlockSpec((tm, tk), x_map),   # activation tile
                pl.BlockSpec((tk, tn), w_map),   # weight tile (K, N)
                pl.BlockSpec((1, tn), b_map),    # bias tile (f32)
            ],
            out_specs=pl.BlockSpec((tm, tn), o_map),
            scratch_shapes=scratch,
        ),
        compiler_params=pltpu.CompilerParams(
            dimension_semantics=("parallel", "parallel", "arbitrary"),
            vmem_limit_bytes=vmem_limit,
        ),
        cost_estimate=cost,
    )(x2d, w_t, b2d)

    return y2d[:m, :n].reshape(batch, seq, n)


def output_layer_forward(x, w_t, b2d, meta):
    """Convenience wrapper: forward with parameters from
    prepare_output_layer_params."""
    return _forward_prepared(x, w_t, b2d, **meta)


if __name__ == "__main__":
    batch, seq, d_model, output_dim = 2, 8, 32, 16

    key = jax.random.PRNGKey(0)
    k_x, k_w = jax.random.split(key)

    # Deterministic init mimicking OutputLayer.init_weights(initrange=0.1):
    # weight ~ U(-0.1, 0.1), bias = 0.
    initrange = 0.1
    weight = jax.random.uniform(
        k_w, (output_dim, d_model), jnp.float32, -initrange, initrange
    )
    bias = jnp.zeros((output_dim,), jnp.float32)
    x = jax.random.normal(k_x, (batch, seq, d_model), jnp.float32)

    y_ref = x @ weight.T + bias  # same math as torch.nn.Linear

    # Default fast path: bf16 MXU compute, f32 accumulation.
    w_t, b2d, meta = prepare_output_layer_params(
        weight, bias, use_bf16=True, m_hint=batch * seq
    )
    y_bf16 = output_layer_forward(x, w_t, b2d, meta)
    jax.block_until_ready(y_bf16)
    assert y_bf16.shape == (batch, seq, output_dim)
    assert y_bf16.dtype == x.dtype
    assert jnp.allclose(y_bf16, y_ref, atol=3e-2, rtol=3e-2)

    # Full-f32 path for a tight numerical check.
    w_t32, b2d32, meta32 = prepare_output_layer_params(
        weight, bias, use_bf16=False, m_hint=batch * seq
    )
    y_f32 = output_layer_forward(x, w_t32, b2d32, meta32)
    jax.block_until_ready(y_f32)
    assert jnp.allclose(y_f32, y_ref, atol=1e-5, rtol=1e-5)

    print("KERNEL_OK")
</pallas_src>

<mosaic_0001>
module attributes {stable_mosaic.version = 11 : i64} {
  func.func @_linear_kernel_single_k(%arg0: i32, %arg1: i32, %arg2: i32, %arg3: memref<16x128xbf16, #tpu.memory_space<vmem>>, %arg4: memref<128x128xbf16, #tpu.memory_space<vmem>>, %arg5: memref<1x128xf32, #tpu.memory_space<vmem>>, %arg6: memref<16x128xf32, #tpu.memory_space<vmem>>) attributes {dimension_semantics = [#tpu.dimension_semantics<parallel>, #tpu.dimension_semantics<parallel>, #tpu.dimension_semantics<arbitrary>], iteration_bounds = array<i64: 1, 1, 1>, scalar_prefetch = 0 : i64, scratch_operands = 0 : i64, tpu.core_type = #tpu.core_type<tc>, window_params = [{transform_indices = @transform_0, window_bounds = array<i64: 16, 128>}, {transform_indices = @transform_1, window_bounds = array<i64: 128, 128>}, {transform_indices = @transform_2, window_bounds = array<i64: 1, 128>}, {transform_indices = @transform_3, window_bounds = array<i64: 16, 128>}]} {
    %c0 = arith.constant 0 : index
    %c0_0 = arith.constant 0 : index
    %0 = vector.load %arg3[%c0, %c0_0] : memref<16x128xbf16, #tpu.memory_space<vmem>>, vector<16x128xbf16>
    %c0_1 = arith.constant 0 : index
    %c0_2 = arith.constant 0 : index
    %1 = vector.load %arg4[%c0_1, %c0_2] : memref<128x128xbf16, #tpu.memory_space<vmem>>, vector<128x128xbf16>
    %cst = arith.constant dense<0.000000e+00> : vector<16x128xf32>
    %2 = tpu.matmul %0, %1, %cst {dimension_numbers = #tpu.dot_dimension_numbers<[1], [0], [0], [1], [0, 0, 1, 1], [], []>} : vector<16x128xbf16>, vector<128x128xbf16>, vector<16x128xf32> -> vector<16x128xf32>
    %c0_3 = arith.constant 0 : index
    %c0_4 = arith.constant 0 : index
    %3 = vector.load %arg5[%c0_3, %c0_4] : memref<1x128xf32, #tpu.memory_space<vmem>>, vector<1x128xf32>
    %4 = vector.broadcast %3 : vector<1x128xf32> to vector<16x128xf32>
    %5 = arith.addf %2, %4 : vector<16x128xf32>
    %c0_5 = arith.constant 0 : index
    %c0_6 = arith.constant 0 : index
    %6 = vector.load %arg6[%c0_5, %c0_6] : memref<16x128xf32, #tpu.memory_space<vmem>>, vector<16x128xf32>
    tpu.vector_store %arg6[%c0_5, %c0_6], %5 {strides = array<i32>} : memref<16x128xf32, #tpu.memory_space<vmem>>, vector<16x128xf32>,
    return
  }
  func.func @transform_0(%arg0: i32, %arg1: i32, %arg2: i32) -> (i32, i32) {
    %c0_i32 = arith.constant 0 : i32
    return %arg0, %arg2 : i32, i32
  }
  func.func @transform_1(%arg0: i32, %arg1: i32, %arg2: i32) -> (i32, i32) {
    %c0_i32 = arith.constant 0 : i32
    return %arg2, %arg1 : i32, i32
  }
  func.func @transform_2(%arg0: i32, %arg1: i32, %arg2: i32) -> (i32, i32) {
    %c0_i32 = arith.constant 0 : i32
    %c0_i32_0 = arith.constant 0 : i32
    return %c0_i32, %arg1 : i32, i32
  }
  func.func @transform_3(%arg0: i32, %arg1: i32, %arg2: i32) -> (i32, i32) {
    %c0_i32 = arith.constant 0 : i32
    return %arg0, %arg1 : i32, i32
  }
}

</mosaic_0001>

<llo_original>
// kernel: _forward_prepared.1
$region0: #{_forward_prepared.1}
  #allocation0 [shape = 'u32[]', space=smem, size = 0x4, offset = 0x4, fixed_abs, tag = 'smem constant byte address 0x4 - core index']
  #allocation1 [shape = 'u32[144,128]{1,0:T(1,128)}', space=vmem, size = 0x12000, scoped, tag = 'internal scratch']
  %s0 = inlined_call_operand.hbm [shape: bf16[16,128], index: 0, kind: input, shape index: {}]
  %s1 = inlined_call_operand.hbm [shape: bf16[128,128], index: 1, kind: input, shape index: {}]
  %s2 = inlined_call_operand.hbm [shape: f32[1,128], index: 2, kind: input, shape index: {}]
  %s3 = inlined_call_operand.hbm [shape: f32[16,128], index: 3, kind: output, shape index: {}]
  %s4 = sld [smem:[#allocation0]]
  $region34: #{_forward_prepared.1} parent=0
    _
  %s6 = ssub.s32 1, %s4
  %s7 = scalar_select 0, %s6, %s4
  $region1: #{_forward_prepared.1} parent=0
    #allocation2 [shape = 'u8[4096]{0}', space=vmem, size = 0x1000, scoped, tag = 'input window, operand 0, single buffered']
    #allocation3 [shape = 's32[1]{0}', space=sflag, size = 0x4, scoped, tag = 'scoped memory for _forward_prepared.1']
    #allocation4 [shape = 's32[1]{0}', space=sflag, size = 0x4, scoped, tag = 'scoped memory for _forward_prepared.1']
    #allocation5 [shape = 'u8[32768]{0}', space=vmem, size = 0x8000, scoped, tag = 'input window, operand 1, single buffered']
    #allocation6 [shape = 's32[1]{0}', space=sflag, size = 0x4, scoped, tag = 'scoped memory for _forward_prepared.1']
    #allocation7 [shape = 'u8[512]{0}', space=vmem, size = 0x400, scoped, tag = 'input window, operand 2, single buffered']
    #allocation8 [shape = 'u8[8192]{0}', space=vmem, size = 0x2000, scoped, tag = 'output window, operand 0, single buffered']
    %8 = vsyncpa [#allocation3], 0
    %9 = vsyncpa [#allocation6], 0
    %10 = vsyncpa [#allocation4], 0
    // Predicated region
    $region2: #{_forward_prepared.1} parent=1 // pred_check
      _
    $region3: #{_forward_prepared.1} parent=1 // pred_check_branch
      %12 = sbr.rel (0) target = $region5
    $region4: #{_forward_prepared.1} parent=1 // pred_region
      %s14 = ssub.s32 128, 128
      %15 = vsyncadd [#allocation3], %s14
      %s16 = sshll.u32 [#allocation2], 4
      %s17 = int_to_ptr.vmem [resolvable:$true] %s16
      %22 = dma.hbm_to_vmem [thread:$0]  %s0, 128, %s17, [#allocation3], 64, 64, 4
    $region5: #{_forward_prepared.1} parent=1 // pred_fallthru
      _
    // Predicated region
    $region6: #{_forward_prepared.1} parent=1 // pred_check
      _
    $region7: #{_forward_prepared.1} parent=1 // pred_check_branch
      %24 = sbr.rel (0) target = $region9
    $region8: #{_forward_prepared.1} parent=1 // pred_region
      %s26 = ssub.s32 1024, 1024
      %27 = vsyncadd [#allocation6], %s26
      %s28 = sshll.u32 [#allocation5], 4
      %s29 = int_to_ptr.vmem [resolvable:$true] %s28
      %34 = dma.hbm_to_vmem [thread:$0]  %s1, 1024, %s29, [#allocation6], 64, 64, 4
    $region9: #{_forward_prepared.1} parent=1 // pred_fallthru
      _
    // Predicated region
    $region10: #{_forward_prepared.1} parent=1 // pred_check
      _
    $region11: #{_forward_prepared.1} parent=1 // pred_check_branch
      %36 = sbr.rel (0) target = $region13
    $region12: #{_forward_prepared.1} parent=1 // pred_region
      %s38 = ssub.s32 16, 16
      %39 = vsyncadd [#allocation6], %s38
      %s41 = sshll.u32 [#allocation7], 4
      %s42 = int_to_ptr.vmem [resolvable:$true] %s41
      %44 = dma.hbm_to_vmem [thread:$0]  %s2, 16, %s42, [#allocation6]
    $region13: #{_forward_prepared.1} parent=1 // pred_fallthru
      _
    // Predicated region
    $region14: #{_forward_prepared.1} parent=1 // pred_check
      _
    $region15: #{_forward_prepared.1} parent=1 // pred_check_branch
      %46 = sbr.rel (0) target = $region17
    $region16: #{_forward_prepared.1} parent=1 // pred_region
      %47 = dma.done [#allocation3], 128
    $region17: #{_forward_prepared.1} parent=1 // pred_fallthru
      _
    // Predicated region
    $region18: #{_forward_prepared.1} parent=1 // pred_check
      _
    $region19: #{_forward_prepared.1} parent=1 // pred_check_branch
      %49 = sbr.rel (0) target = $region21
    $region20: #{_forward_prepared.1} parent=1 // pred_region
      %50 = dma.done [#allocation6], 1024
    $region21: #{_forward_prepared.1} parent=1 // pred_fallthru
      _
    // Predicated region
    $region22: #{_forward_prepared.1} parent=1 // pred_check
      _
    $region23: #{_forward_prepared.1} parent=1 // pred_check_branch
      %52 = sbr.rel (0) target = $region25
    $region24: #{_forward_prepared.1} parent=1 // pred_region
      %53 = dma.done [#allocation6], 16
    $region25: #{_forward_prepared.1} parent=1 // pred_fallthru
      _
    %v55 = vld [vmem:[#allocation2] sm:$0xf]
    %v56 = vld [vmem:[#allocation2 + $0x4] sm:$0xf]
    %v57 = vld [vmem:[#allocation5] sm:$0xf]
    %v58 = vld [vmem:[#allocation5 + $0x4] sm:$0xf]
    %v59 = vld [vmem:[#allocation5 + $0x8] sm:$0xf]
    %v60 = vld [vmem:[#allocation5 + $0xc] sm:$0xf]
    %v61 = vld [vmem:[#allocation5 + $0x10] sm:$0xf]
    %v62 = vld [vmem:[#allocation5 + $0x14] sm:$0xf]
    %v63 = vld [vmem:[#allocation5 + $0x18] sm:$0xf]
    %v64 = vld [vmem:[#allocation5 + $0x1c] sm:$0xf]
    %v65 = vld [vmem:[#allocation5 + $0x20] sm:$0xf]
    %v66 = vld [vmem:[#allocation5 + $0x24] sm:$0xf]
    %v67 = vld [vmem:[#allocation5 + $0x28] sm:$0xf]
    %v68 = vld [vmem:[#allocation5 + $0x2c] sm:$0xf]
    %v69 = vld [vmem:[#allocation5 + $0x30] sm:$0xf]
    %v70 = vld [vmem:[#allocation5 + $0x34] sm:$0xf]
    %v71 = vld [vmem:[#allocation5 + $0x38] sm:$0xf]
    %v72 = vld [vmem:[#allocation5 + $0x3c] sm:$0xf]
    %v73 = vld [vmem:[#allocation7] sm:$0x1]
    %v75 = vlaneseq
    %v76 = vshrl.u32 %v75, 7
    %v77 = vsub.s32 0, %v76
    %v78 = vrot.slane %v73, %v77
    %v82 = vunpack.c.l.b16 %v55
    %v83 = vunpack.c.l.b16 %v56
    %v84 = vpack.c.b16 %v83, %v82
    %v102 = vunpack.c.l.b16 %v57
    %v103 = vunpack.c.l.b16 %v58
    %v104 = vunpack.c.l.b16 %v59
    %v105 = vunpack.c.l.b16 %v60
    %v106 = vunpack.c.l.b16 %v61
    %v107 = vunpack.c.l.b16 %v62
    %v108 = vunpack.c.l.b16 %v63
    %v109 = vunpack.c.l.b16 %v64
    %v110 = vunpack.c.l.b16 %v65
    %v111 = vunpack.c.l.b16 %v66
    %v112 = vunpack.c.l.b16 %v67
    %v113 = vunpack.c.l.b16 %v68
    %v114 = vunpack.c.l.b16 %v69
    %v115 = vunpack.c.l.b16 %v70
    %v116 = vunpack.c.l.b16 %v71
    %v117 = vunpack.c.l.b16 %v72
    %v118 = vpack.c.b16 %v103, %v102
    %v119 = vpack.c.b16 %v105, %v104
    %v120 = vpack.c.b16 %v107, %v106
    %v121 = vpack.c.b16 %v109, %v108
    %v122 = vpack.c.b16 %v111, %v110
    %v123 = vpack.c.b16 %v113, %v112
    %v124 = vpack.c.b16 %v115, %v114
    %v125 = vpack.c.b16 %v117, %v116
    %134 = vmatprep.subr.bf16.mxu0 0
    %135 = vmatpush1.bf16.msra.mxu0 %v118
    %136 = vmatprep.subr.bf16.mxu0 0
    %137 = vmatpush1.bf16.msra.mxu0 %v119
    %138 = vmatprep.subr.bf16.mxu0 0
    %139 = vmatpush1.bf16.msra.mxu0 %v120
    %140 = vmatprep.subr.bf16.mxu0 0
    %141 = vmatpush1.bf16.msra.mxu0 %v121
    %142 = vmatprep.subr.bf16.mxu0 0
    %143 = vmatpush1.bf16.msra.mxu0 %v122
    %144 = vmatprep.subr.bf16.mxu0 0
    %145 = vmatpush1.bf16.msra.mxu0 %v123
    %146 = vmatprep.subr.bf16.mxu0 0
    %147 = vmatpush1.bf16.msra.mxu0 %v124
    %148 = vmatprep.subr.bf16.mxu0 0
    %149 = vmatpush1.bf16.msra.mxu0 %v125
    %150 = vmatprep.subr.bf16.mxu0 0
    %151 = vmatpush1.bf16.msra.mxu0 0
    %152 = vmatprep.subr.bf16.mxu0 0
    %153 = vmatpush1.bf16.msra.mxu0 0
    %154 = vmatprep.subr.bf16.mxu0 0
    %155 = vmatpush1.bf16.msra.mxu0 0
    %156 = vmatprep.subr.bf16.mxu0 0
    %157 = vmatpush1.bf16.msra.mxu0 0
    %158 = vmatprep.subr.bf16.mxu0 0
    %159 = vmatpush1.bf16.msra.mxu0 0
    %160 = vmatprep.subr.bf16.mxu0 0
    %161 = vmatpush1.bf16.msra.mxu0 0
    %162 = vmatprep.subr.bf16.mxu0 0
    %163 = vmatpush1.bf16.msra.mxu0 0
    %164 = vmatprep.subr.bf16.mxu0 0
    %165 = vmatpush1.bf16.msra.mxu0 0
    %166 = vmatprep.mubr.bf16.mxu0 0
    %167 = vmatmul.mubr.bf16.gmra.mrb[0].mxu0 %v84
    %v168 = vpop.f32.mrb[0].mxu0
    %v169 = vadd.f32 %v78, %v168
    %v170 = vpop.f32.mrb[0].mxu0
    %v171 = vpop.f32.mrb[0].mxu0
    %v172 = vadd.f32 %v78, %v171
    %v173 = vpop.f32.mrb[0].mxu0
    %174 = vdwg.mxu0
    %175 = vst [vmem:[#allocation8] sm:$0xff] %v169
    %176 = vst [vmem:[#allocation8 + $0x8] sm:$0xff] %v172
    // Predicated region
    $region26: #{_forward_prepared.1} parent=1 // pred_check
      _
    $region27: #{_forward_prepared.1} parent=1 // pred_check_branch
      %178 = sbr.rel (0) target = $region29
    $region28: #{_forward_prepared.1} parent=1 // pred_region
      %s180 = ssub.s32 256, 256
      %181 = vsyncadd [#allocation4], %s180
      %s182 = sshll.u32 [#allocation8], 4
      %s183 = int_to_ptr.vmem [resolvable:$true] %s182
      %188 = dma.vmem_to_hbm [thread:$0]  %s183, 256, %s3, [#allocation4], 128, 128, 8
    $region29: #{_forward_prepared.1} parent=1 // pred_fallthru
      _
    // Predicated region
    $region30: #{_forward_prepared.1} parent=1 // pred_check
      _
    $region31: #{_forward_prepared.1} parent=1 // pred_check_branch
      %190 = sbr.rel (0) target = $region33
    $region32: #{_forward_prepared.1} parent=1 // pred_region
      %191 = dma.done [#allocation4], 256
    $region33: #{_forward_prepared.1} parent=1 // pred_fallthru
      _
    %192 = vsyncpa [#allocation3], 1
    %193 = vsyncpa [#allocation6], 1
    %194 = vsyncpa [#allocation4], 1

</llo_original>
